<compile_context>
chip_gen: v6e
topology: v6e:2x2x1
jax: 0.10.0
libtpu: 0.0.40
codegen_flags: <defaults>
</compile_context>

<pallas_src>
import functools

import jax
import jax.numpy as jnp
from jax.experimental import pallas as pl
from jax.experimental.pallas import tpu as pltpu


# --------------------------------------------------------------------------
# Hardware / tiling planning
# --------------------------------------------------------------------------

def _tpu_vmem_and_cores():
    """Best-effort (VMEM capacity, TensorCores-per-chip) query; safe defaults."""
    vmem_cap = 128 << 20
    ncores = 1
    try:
        info = pltpu.get_tpu_info()
        vmem_cap = int(getattr(info, "vmem_capacity_bytes", vmem_cap))
        for attr in ("num_tensorcores", "tensorcore_count", "num_cores",
                     "core_count", "cores_per_chip"):
            v = getattr(info, attr, None)
            if v:
                ncores = int(v)
                break
    except Exception:
        pass
    # v7x-class parts pair 64 MiB VMEM/core with 2 TensorCores per chip.
    if ncores <= 1 and vmem_cap <= (64 << 20):
        ncores = 2
    return vmem_cap, ncores


def _plan_fused_batch_tile(B, bytes_per_row, budget, ncores):
    """Rows per grid step: VMEM-budgeted, grid balanced across TensorCores."""
    bt = int(max(1, min(B, budget // max(bytes_per_row, 1))))
    if ncores > 1 and B > 1:
        steps = pl.cdiv(B, bt)
        if steps % ncores != 0:
            # Round the step count up to a multiple of the core count and
            # rebalance (e.g. grid 1 -> 2, grid 3 -> 4) so no core sits idle
            # on the tail step.  Only done on multi-TC chips: splitting a
            # batch that fits in one block on v5e/v6e is pure overhead.
            steps = pl.cdiv(steps, ncores) * ncores
            bt = int(max(1, pl.cdiv(B, steps)))
    return bt


def _pick_l_tile(C, L, itemsize, byte_budget):
    """L-tile (multiple of 128, or full L when L <= 128) fitting byte_budget."""
    if L <= 128:
        return int(L)
    t = byte_budget // max(C * itemsize, 1)
    t = (t // 128) * 128
    t = min(t, pl.cdiv(L, 128) * 128)
    return int(max(128, t))


# --------------------------------------------------------------------------
# Fused single-pass kernel
# --------------------------------------------------------------------------

def _se1d_fused_kernel(x_ref, w1t_ref, w2t_ref, o_ref, *, inv_l, rows_per_chunk):
    # x_ref  : (bt, C, L)  current batch tile (input dtype)
    # w1t_ref: (C, Cr)     fc1 weight, pre-transposed (f32 or bf16)
    # w2t_ref: (Cr, C)     fc2 weight, pre-transposed (f32 or bf16)
    # o_ref  : (bt, C, L)
    #
    # Processed in row-chunks so the f32 pooling intermediate stays bounded
    # for sub-f32 inputs (for f32, rows_per_chunk == bt and astype is a no-op).
    # Ragged last batch tile: padded rows produce garbage pooled/scale values,
    # but their output rows are masked on write-back, so the result is correct.
    bt = x_ref.shape[0]
    w1t = w1t_ref[...]
    w2t = w2t_ref[...]
    for b0 in range(0, bt, rows_per_chunk):
        n = min(rows_per_chunk, bt - b0)
        # --- squeeze: mean over L (f32 accumulation) ----------------------
        xc = x_ref[b0:b0 + n]                                       # (n, C, L)
        pooled = jnp.sum(xc.astype(jnp.float32), axis=-1) * jnp.float32(inv_l)
        # --- excitation: fc1 + ReLU, fc2 + sigmoid (MXU, no transposes) ---
        h = jnp.dot(pooled.astype(w1t.dtype), w1t,
                    preferred_element_type=jnp.float32)             # (n, Cr)
        h = jnp.maximum(h, 0.0)
        s = jnp.dot(h.astype(w2t.dtype), w2t,
                    preferred_element_type=jnp.float32)             # (n, C)
        s = jax.nn.sigmoid(s)
        # --- rescale: re-read x from VMEM, multiply in the input dtype ----
        scale = s.astype(o_ref.dtype)[:, :, None]                   # (n, C, 1)
        o_ref[b0:b0 + n] = x_ref[b0:b0 + n] * scale


def _se1d_fused(x, w1t, w2t, *, budget, ncores, vmem_cap, w_bytes, donate_x):
    B, C, L = x.shape
    itemsize = jnp.dtype(x.dtype).itemsize
    bytes_per_row = C * L * itemsize

    bt = _plan_fused_batch_tile(B, bytes_per_row, budget, ncores)
    grid_b = pl.cdiv(B, bt)

    # Bound the f32 pooling intermediate (~2 MiB) for sub-f32 dtypes; cap the
    # static unroll at ~16 chunks.
    if jnp.dtype(x.dtype) == jnp.dtype(jnp.float32):
        rows_per_chunk = bt
        pool_bytes = 0
    else:
        rows_per_chunk = max(1, (2 << 20) // max(C * L * 4, 1))
        rows_per_chunk = max(rows_per_chunk, pl.cdiv(bt, 16))
        rows_per_chunk = min(rows_per_chunk, bt)
        pool_bytes = rows_per_chunk * C * L * 4

    block_bytes = bt * C * L * itemsize
    # x + out, double-buffered, plus resident weights, bounded pooling
    # intermediate and compiler slack.
    vmem_limit = 4 * block_bytes + 2 * w_bytes + pool_bytes + (8 << 20)
    vmem_limit = int(max(16 << 20, min(vmem_cap - (2 << 20), vmem_limit)))

    kernel = functools.partial(_se1d_fused_kernel, inv_l=1.0 / L,
                               rows_per_chunk=int(rows_per_chunk))
    return pl.pallas_call(
        kernel,
        out_shape=jax.ShapeDtypeStruct((B, C, L), x.dtype),
        grid_spec=pltpu.PrefetchScalarGridSpec(
            num_scalar_prefetch=0,
            grid=(grid_b,),
            in_specs=[
                pl.BlockSpec((bt, C, L), lambda b: (b, 0, 0)),
                pl.BlockSpec(w1t.shape, lambda b: (0, 0)),   # VMEM-resident
                pl.BlockSpec(w2t.shape, lambda b: (0, 0)),   # VMEM-resident
            ],
            out_specs=pl.BlockSpec((bt, C, L), lambda b: (b, 0, 0)),
        ),
        compiler_params=pltpu.CompilerParams(
            dimension_semantics=("parallel",),
            vmem_limit_bytes=vmem_limit,
        ),
        input_output_aliases=({0: 0} if donate_x else {}),
    )(x, w1t, w2t)


# --------------------------------------------------------------------------
# Two-phase L-tiled path (single (1, C, L) row does not fit the block budget)
# --------------------------------------------------------------------------

def _se1d_pool_excite_kernel(x_ref, w1t_ref, w2t_ref, s_ref, acc_ref,
                             *, inv_l, l_total, need_mask):
    # grid = (B, nL).  x_ref: (1, C, tl); s_ref: (1, C, 1) f32 out;
    # acc_ref: VMEM (1, C) f32 running sum (persists across the L axis).
    l = pl.program_id(1)

    @pl.when(l == 0)
    def _init():
        acc_ref[...] = jnp.zeros_like(acc_ref)

    x_blk = x_ref[...].astype(jnp.float32)                 # (1, C, tl)
    if need_mask:
        # Ragged last L tile: zero the lanes past the true length so they do
        # not pollute the mean.
        tl = x_ref.shape[-1]
        col = jax.lax.broadcasted_iota(jnp.int32, x_ref.shape, 2)
        x_blk = jnp.where(l * tl + col < l_total, x_blk, 0.0)
    acc_ref[...] += jnp.sum(x_blk, axis=-1)

    @pl.when(l == pl.num_programs(1) - 1)
    def _finalize():
        pooled = acc_ref[...] * jnp.float32(inv_l)                       # (1, C)
        h = jnp.maximum(jnp.dot(pooled.astype(w1t_ref.dtype), w1t_ref[...],
                                preferred_element_type=jnp.float32), 0.0)
        s = jax.nn.sigmoid(jnp.dot(h.astype(w2t_ref.dtype), w2t_ref[...],
                                   preferred_element_type=jnp.float32))  # (1, C)
        s_ref[...] = s[:, :, None]                                       # (1, C, 1)


def _se1d_rescale_kernel(x_ref, s_ref, o_ref):
    # x_ref: (1, C, tl); s_ref: (1, C, 1) f32; o_ref: (1, C, tl)
    o_ref[...] = x_ref[...] * s_ref[...].astype(o_ref.dtype)


def _se1d_two_phase(x, w1t, w2t, *, budget, ncores, vmem_cap, w_bytes, donate_x):
    del ncores  # grid already has two parallel-capable axes where possible
    B, C, L = x.shape
    itemsize = jnp.dtype(x.dtype).itemsize

    # Phase A streams read-only: modest (~4 MiB) tiles are already near
    # roofline.  Phase B (read + write) uses the full block budget.
    tl_a = _pick_l_tile(C, L, itemsize, min(budget, 4 << 20))
    tl_b = _pick_l_tile(C, L, itemsize, budget)
    nl_a = pl.cdiv(L, tl_a)
    nl_b = pl.cdiv(L, tl_b)

    # ---- phase A: pooled sums over L tiles + excitation -> s (B, C, 1) ----
    kernel_a = functools.partial(_se1d_pool_excite_kernel, inv_l=1.0 / L,
                                 l_total=L, need_mask=(L % tl_a) != 0)
    tile_a_bytes = C * tl_a * itemsize
    vmem_a = 4 * tile_a_bytes + 4 * C * tl_a + 2 * w_bytes + (8 << 20)
    vmem_a = int(max(16 << 20, min(vmem_cap - (2 << 20), vmem_a)))
    s = pl.pallas_call(
        kernel_a,
        out_shape=jax.ShapeDtypeStruct((B, C, 1), jnp.float32),
        grid_spec=pltpu.PrefetchScalarGridSpec(
            num_scalar_prefetch=0,
            grid=(B, nl_a),
            in_specs=[
                pl.BlockSpec((1, C, tl_a), lambda b, l: (b, 0, l)),
                pl.BlockSpec(w1t.shape, lambda b, l: (0, 0)),
                pl.BlockSpec(w2t.shape, lambda b, l: (0, 0)),
            ],
            out_specs=pl.BlockSpec((1, C, 1), lambda b, l: (b, 0, 0)),
            scratch_shapes=[pltpu.VMEM((1, C), jnp.float32)],
        ),
        compiler_params=pltpu.CompilerParams(
            dimension_semantics=("parallel", "arbitrary"),
            vmem_limit_bytes=vmem_a,
        ),
    )(x, w1t, w2t)

    # ---- phase B: o = x * s, streamed over (B, L) tiles --------------------
    tile_b_bytes = C * tl_b * itemsize
    vmem_b = 4 * tile_b_bytes + (8 << 20)
    vmem_b = int(max(16 << 20, min(vmem_cap - (2 << 20), vmem_b)))
    return pl.pallas_call(
        _se1d_rescale_kernel,
        out_shape=jax.ShapeDtypeStruct((B, C, L), x.dtype),
        grid_spec=pltpu.PrefetchScalarGridSpec(
            num_scalar_prefetch=0,
            grid=(B, nl_b),
            in_specs=[
                pl.BlockSpec((1, C, tl_b), lambda b, l: (b, 0, l)),
                pl.BlockSpec((1, C, 1), lambda b, l: (b, 0, 0)),
            ],
            out_specs=pl.BlockSpec((1, C, tl_b), lambda b, l: (b, 0, l)),
        ),
        compiler_params=pltpu.CompilerParams(
            dimension_semantics=("parallel", "parallel"),
            vmem_limit_bytes=vmem_b,
        ),
        input_output_aliases=({0: 0} if donate_x else {}),
    )(x, s)


# --------------------------------------------------------------------------
# Public wrapper
# --------------------------------------------------------------------------

def se_module_1d(x, w1, w2, *, donate_x=False, max_block_bytes=None):
    """SEModule1d forward.  x: (B, C, L); w1: (C//r, C); w2: (C, C//r)."""
    B, C, L = x.shape
    Cr = w1.shape[0]
    assert w1.shape == (Cr, C) and w2.shape == (C, Cr)

    vmem_cap, ncores = _tpu_vmem_and_cores()
    itemsize = jnp.dtype(x.dtype).itemsize

    # Per-block budget: x + out double-buffered => ~4 blocks resident, plus
    # weights and compiler slack -> vmem/6; a bit smaller for sub-f32 dtypes
    # to leave room for the bounded f32 pooling intermediates.
    budget = vmem_cap // (6 if itemsize >= 4 else 8)
    if max_block_bytes is not None:      # test/override hook
        budget = int(max_block_bytes)

    # Layout plumbing in the wrapper: pre-transpose (and pre-cast) the tiny
    # excitation weights so no .T / per-step recast shows up in the kernel.
    w_dtype = jnp.bfloat16 if jnp.dtype(x.dtype) == jnp.dtype(jnp.bfloat16) else jnp.float32
    w1t = jnp.asarray(w1, dtype=w_dtype).T                  # (C, Cr)
    w2t = jnp.asarray(w2, dtype=w_dtype).T                  # (Cr, C)
    w_bytes = 2 * C * Cr * jnp.dtype(w_dtype).itemsize

    bytes_per_row = C * L * itemsize
    common = dict(budget=budget, ncores=ncores, vmem_cap=vmem_cap,
                  w_bytes=w_bytes, donate_x=donate_x)
    if bytes_per_row <= budget:
        return _se1d_fused(x, w1t, w2t, **common)
    return _se1d_two_phase(x, w1t, w2t, **common)


def se_module_1d_ref(x, w1, w2):
    """Pure-JAX reference matching the PyTorch SEModule1d forward."""
    pooled = jnp.mean(x.astype(jnp.float32), axis=-1)          # (B, C)
    h = jnp.maximum(pooled @ w1.astype(jnp.float32).T, 0.0)    # (B, Cr)
    s = jax.nn.sigmoid(h @ w2.astype(jnp.float32).T)           # (B, C)
    return (x.astype(jnp.float32) * s[:, :, None]).astype(x.dtype)


# --------------------------------------------------------------------------
# Self-test
# --------------------------------------------------------------------------

if __name__ == "__main__":
    root = jax.random.PRNGKey(0)

    def make(B, C, r, L, dtype, salt):
        Cr = C // r
        kx, k1, k2 = jax.random.split(jax.random.fold_in(root, salt), 3)
        x = jax.random.normal(kx, (B, C, L), dtype=jnp.float32).astype(dtype)
        w1 = jax.random.normal(k1, (Cr, C), dtype=jnp.float32) * 0.1
        w2 = jax.random.normal(k2, (C, Cr), dtype=jnp.float32) * 0.1
        return x, w1, w2

    # 1) fused single-pass path, f32 (SEModule1d(channels=32, reduction=4))
    x, w1, w2 = make(4, 32, 4, 128, jnp.float32, 1)
    out = jax.block_until_ready(se_module_1d(x, w1, w2))
    ref = se_module_1d_ref(x, w1, w2)
    assert out.shape == x.shape
    assert jnp.allclose(out, ref, atol=1e-5, rtol=1e-5), "fused f32 mismatch"

    # 2) fused path, bf16 activations (bf16 excitation weights + bf16 rescale;
    #    tolerance loosened per-dtype instead of changing the kernel)
    xb, w1b, w2b = make(4, 32, 4, 128, jnp.bfloat16, 2)
    outb = jax.block_until_ready(se_module_1d(xb, w1b, w2b))
    refb = se_module_1d_ref(xb, w1b, w2b)
    assert jnp.allclose(outb.astype(jnp.float32), refb.astype(jnp.float32),
                        atol=5e-2, rtol=5e-2), "fused bf16 mismatch"

    # 3) two-phase L-tiled path (forced via a tiny block budget), ragged L
    xt, w1t_, w2t_ = make(3, 16, 4, 200, jnp.float32, 3)
    outt = jax.block_until_ready(
        se_module_1d(xt, w1t_, w2t_, max_block_bytes=8 * 1024))
    reft = se_module_1d_ref(xt, w1t_, w2t_)
    assert jnp.allclose(outt, reft, atol=1e-5, rtol=1e-5), "two-phase mismatch"

    print("KERNEL_OK")
</pallas_src>

<mosaic_0001>
module attributes {stable_mosaic.version = 11 : i64} {
  func.func @_se1d_fused_kernel(%arg0: i32, %arg1: memref<4x32x128xf32, #tpu.memory_space<vmem>>, %arg2: memref<32x8xf32, #tpu.memory_space<vmem>>, %arg3: memref<8x32xf32, #tpu.memory_space<vmem>>, %arg4: memref<4x32x128xf32, #tpu.memory_space<vmem>>) attributes {dimension_semantics = [#tpu.dimension_semantics<parallel>], iteration_bounds = array<i64: 1>, scalar_prefetch = 0 : i64, scratch_operands = 0 : i64, tpu.core_type = #tpu.core_type<tc>, window_params = [{transform_indices = @transform_0, window_bounds = array<i64: 4, 32, 128>}, {pipeline_mode = #tpu.pipeline_mode<synchronous>, transform_indices = @transform_1, window_bounds = array<i64: 32, 8>}, {pipeline_mode = #tpu.pipeline_mode<synchronous>, transform_indices = @transform_2, window_bounds = array<i64: 8, 32>}, {transform_indices = @transform_3, window_bounds = array<i64: 4, 32, 128>}]} {
    %c0 = arith.constant 0 : index
    %c0_0 = arith.constant 0 : index
    %0 = vector.load %arg2[%c0, %c0_0] : memref<32x8xf32, #tpu.memory_space<vmem>>, vector<32x8xf32>
    %c0_1 = arith.constant 0 : index
    %c0_2 = arith.constant 0 : index
    %1 = vector.load %arg3[%c0_1, %c0_2] : memref<8x32xf32, #tpu.memory_space<vmem>>, vector<8x32xf32>
    %c0_3 = arith.constant 0 : index
    %c0_4 = arith.constant 0 : index
    %c0_5 = arith.constant 0 : index
    %2 = vector.load %arg1[%c0_3, %c0_4, %c0_5] : memref<4x32x128xf32, #tpu.memory_space<vmem>>, vector<4x32x128xf32>
    %cst = arith.constant dense<0.000000e+00> : vector<4x32xf32>
    %3 = vector.multi_reduction <add>, %2, %cst [2] : vector<4x32x128xf32> to vector<4x32xf32>
    %cst_6 = arith.constant 7.812500e-03 : f32
    %4 = vector.broadcast %cst_6 : f32 to vector<4x32xf32>
    %5 = arith.mulf %3, %4 : vector<4x32xf32>
    %cst_7 = arith.constant dense<0.000000e+00> : vector<4x8xf32>
    %6 = tpu.matmul %5, %0, %cst_7 {dimension_numbers = #tpu.dot_dimension_numbers<[1], [0], [0], [1], [0, 0, 1, 1], [], []>} : vector<4x32xf32>, vector<32x8xf32>, vector<4x8xf32> -> vector<4x8xf32>
    %cst_8 = arith.constant 0.000000e+00 : f32
    %7 = vector.broadcast %cst_8 : f32 to vector<4x8xf32>
    %8 = arith.maximumf %6, %7 : vector<4x8xf32>
    %cst_9 = arith.constant dense<0.000000e+00> : vector<4x32xf32>
    %9 = tpu.matmul %8, %1, %cst_9 {dimension_numbers = #tpu.dot_dimension_numbers<[1], [0], [0], [1], [0, 0, 1, 1], [], []>} : vector<4x8xf32>, vector<8x32xf32>, vector<4x32xf32> -> vector<4x32xf32>
    %10 = arith.negf %9 : vector<4x32xf32>
    %11 = math.exp %10 : vector<4x32xf32>
    %cst_10 = arith.constant 1.000000e+00 : f32
    %12 = vector.broadcast %cst_10 : f32 to vector<4x32xf32>
    %13 = arith.addf %12, %11 : vector<4x32xf32>
    %14 = arith.divf %12, %13 : vector<4x32xf32>
    %15 = vector.shape_cast %14 : vector<4x32xf32> to vector<4x32x1xf32>
    %c0_11 = arith.constant 0 : index
    %c0_12 = arith.constant 0 : index
    %c0_13 = arith.constant 0 : index
    %16 = vector.load %arg1[%c0_11, %c0_12, %c0_13] : memref<4x32x128xf32, #tpu.memory_space<vmem>>, vector<4x32x128xf32>
    %17 = vector.broadcast %15 : vector<4x32x1xf32> to vector<4x32x128xf32>
    %18 = arith.mulf %16, %17 : vector<4x32x128xf32>
    %c0_14 = arith.constant 0 : index
    %c0_15 = arith.constant 0 : index
    %c0_16 = arith.constant 0 : index
    %19 = vector.load %arg4[%c0_14, %c0_15, %c0_16] : memref<4x32x128xf32, #tpu.memory_space<vmem>>, vector<4x32x128xf32>
    tpu.vector_store %arg4[%c0_14, %c0_15, %c0_16], %18 {strides = array<i32>} : memref<4x32x128xf32, #tpu.memory_space<vmem>>, vector<4x32x128xf32>,
    return
  }
  func.func @transform_0(%arg0: i32) -> (i32, i32, i32) {
    %c0_i32 = arith.constant 0 : i32
    %c0_i32_0 = arith.constant 0 : i32
    %c0_i32_1 = arith.constant 0 : i32
    return %arg0, %c0_i32, %c0_i32_0 : i32, i32, i32
  }
  func.func @transform_1(%arg0: i32) -> (i32, i32) {
    %c0_i32 = arith.constant 0 : i32
    %c0_i32_0 = arith.constant 0 : i32
    %c0_i32_1 = arith.constant 0 : i32
    return %c0_i32, %c0_i32_0 : i32, i32
  }
  func.func @transform_2(%arg0: i32) -> (i32, i32) {
    %c0_i32 = arith.constant 0 : i32
    %c0_i32_0 = arith.constant 0 : i32
    %c0_i32_1 = arith.constant 0 : i32
    return %c0_i32, %c0_i32_0 : i32, i32
  }
  func.func @transform_3(%arg0: i32) -> (i32, i32, i32) {
    %c0_i32 = arith.constant 0 : i32
    %c0_i32_0 = arith.constant 0 : i32
    %c0_i32_1 = arith.constant 0 : i32
    return %arg0, %c0_i32, %c0_i32_0 : i32, i32, i32
  }
}

</mosaic_0001>

<llo_original>
// kernel: tpu_custom_call.1
$region0: #{tpu_custom_call.1}
  #allocation0 [shape = 'u32[]', space=smem, size = 0x4, offset = 0x4, fixed_abs, tag = 'smem constant byte address 0x4 - core index']
  #allocation1 [shape = 'u32[144,128]{1,0:T(1,128)}', space=vmem, size = 0x12000, scoped, tag = 'internal scratch']
  %s0 = inlined_call_operand.hbm [shape: f32[4,32,128], index: 0, kind: input, shape index: {}]
  %s1 = inlined_call_operand.vmem [shape: f32[32,8], index: 1, kind: input, shape index: {}]
  %s2 = inlined_call_operand.vmem [shape: f32[8,32], index: 2, kind: input, shape index: {}]
  %s3 = inlined_call_operand.hbm [shape: f32[4,32,128], index: 3, kind: output, shape index: {}]
  %s4 = sld [smem:[#allocation0]]
  $region26: #{tpu_custom_call.1} parent=0
    _
  %s6 = ssub.s32 1, %s4
  %s7 = scalar_select 0, %s6, %s4
  $region1: #{tpu_custom_call.1} parent=0
    #allocation2 [shape = 'u8[65536]{0}', space=vmem, size = 0x10000, scoped, tag = 'input window, operand 0, single buffered']
    #allocation3 [shape = 's32[1]{0}', space=sflag, size = 0x4, scoped, tag = 'scoped memory for tpu_custom_call.1']
    #allocation4 [shape = 's32[1]{0}', space=sflag, size = 0x4, scoped, tag = 'scoped memory for tpu_custom_call.1']
    #allocation5 [shape = 'u8[65536]{0}', space=vmem, size = 0x10000, scoped, tag = 'output window, operand 0, single buffered']
    %8 = vsyncpa [#allocation3], 0
    %9 = vsyncpa [#allocation4], 0
    // Predicated region
    $region2: #{tpu_custom_call.1} parent=1 // pred_check
      _
    $region3: #{tpu_custom_call.1} parent=1 // pred_check_branch
      %11 = sbr.rel (0) target = $region5
    $region4: #{tpu_custom_call.1} parent=1 // pred_region
      %s13 = ssub.s32 2048, 2048
      %14 = vsyncadd [#allocation3], %s13
      %s15 = sshll.u32 [#allocation2], 4
      %s16 = int_to_ptr.vmem [resolvable:$true] %s15
      %21 = dma.hbm_to_vmem [thread:$0]  %s0, 2048, %s16, [#allocation3], 128, 128, 8
    $region5: #{tpu_custom_call.1} parent=1 // pred_fallthru
      _
    // Predicated region
    $region6: #{tpu_custom_call.1} parent=1 // pred_check
      _
    $region7: #{tpu_custom_call.1} parent=1 // pred_check_branch
      %23 = sbr.rel (0) target = $region9
    $region8: #{tpu_custom_call.1} parent=1 // pred_region
      _
    $region9: #{tpu_custom_call.1} parent=1 // pred_fallthru
      _
    // Predicated region
    $region10: #{tpu_custom_call.1} parent=1 // pred_check
      _
    $region11: #{tpu_custom_call.1} parent=1 // pred_check_branch
      %25 = sbr.rel (0) target = $region13
    $region12: #{tpu_custom_call.1} parent=1 // pred_region
      _
    $region13: #{tpu_custom_call.1} parent=1 // pred_fallthru
      _
    // Predicated region
    $region14: #{tpu_custom_call.1} parent=1 // pred_check
      _
    $region15: #{tpu_custom_call.1} parent=1 // pred_check_branch
      %27 = sbr.rel (0) target = $region17
    $region16: #{tpu_custom_call.1} parent=1 // pred_region
      %28 = dma.done [#allocation3], 2048
    $region17: #{tpu_custom_call.1} parent=1 // pred_fallthru
      _
    %v29 = vld [vmem:[%s1] sm:$0xff]
    %v30 = vld [vmem:[%s1 + $0x8] sm:$0xff]
    %v31 = vld [vmem:[%s1 + $0x10] sm:$0xff]
    %v32 = vld [vmem:[%s1 + $0x18] sm:$0xff]
    %v33 = vld [vmem:[%s2] sm:$0xff]
    %v34 = vld [vmem:[#allocation2] sm:$0xff]
    %v35 = vld [vmem:[#allocation2 + $0x8] sm:$0xff]
    %v36 = vld [vmem:[#allocation2 + $0x10] sm:$0xff]
    %v37 = vld [vmem:[#allocation2 + $0x18] sm:$0xff]
    %v38 = vld [vmem:[#allocation2 + $0x20] sm:$0xff]
    %v39 = vld [vmem:[#allocation2 + $0x28] sm:$0xff]
    %v40 = vld [vmem:[#allocation2 + $0x30] sm:$0xff]
    %v41 = vld [vmem:[#allocation2 + $0x38] sm:$0xff]
    %v42 = vld [vmem:[#allocation2 + $0x40] sm:$0xff]
    %v43 = vld [vmem:[#allocation2 + $0x48] sm:$0xff]
    %v44 = vld [vmem:[#allocation2 + $0x50] sm:$0xff]
    %v45 = vld [vmem:[#allocation2 + $0x58] sm:$0xff]
    %v46 = vld [vmem:[#allocation2 + $0x60] sm:$0xff]
    %v47 = vld [vmem:[#allocation2 + $0x68] sm:$0xff]
    %v48 = vld [vmem:[#allocation2 + $0x70] sm:$0xff]
    %v49 = vld [vmem:[#allocation2 + $0x78] sm:$0xff]
    %50 = vadd.xlane.f32.xlu0 %v34
    %v51 = vpop.xlane.xlu0 %50
    %52 = vadd.xlane.f32.xlu0 %v35
    %v53 = vpop.xlane.xlu0 %52
    %54 = vadd.xlane.f32.xlu0 %v36
    %v55 = vpop.xlane.xlu0 %54
    %56 = vadd.xlane.f32.xlu0 %v37
    %v57 = vpop.xlane.xlu0 %56
    %58 = vadd.xlane.f32.xlu0 %v38
    %v59 = vpop.xlane.xlu0 %58
    %60 = vadd.xlane.f32.xlu0 %v39
    %v61 = vpop.xlane.xlu0 %60
    %62 = vadd.xlane.f32.xlu0 %v40
    %v63 = vpop.xlane.xlu0 %62
    %64 = vadd.xlane.f32.xlu0 %v41
    %v65 = vpop.xlane.xlu0 %64
    %66 = vadd.xlane.f32.xlu0 %v42
    %v67 = vpop.xlane.xlu0 %66
    %68 = vadd.xlane.f32.xlu0 %v43
    %v69 = vpop.xlane.xlu0 %68
    %70 = vadd.xlane.f32.xlu0 %v44
    %v71 = vpop.xlane.xlu0 %70
    %72 = vadd.xlane.f32.xlu0 %v45
    %v73 = vpop.xlane.xlu0 %72
    %74 = vadd.xlane.f32.xlu0 %v46
    %v75 = vpop.xlane.xlu0 %74
    %76 = vadd.xlane.f32.xlu0 %v47
    %v77 = vpop.xlane.xlu0 %76
    %78 = vadd.xlane.f32.xlu0 %v48
    %v79 = vpop.xlane.xlu0 %78
    %80 = vadd.xlane.f32.xlu0 %v49
    %v81 = vpop.xlane.xlu0 %80
    %v82 = vmul.f32 %v51, 0.0078125
    %v83 = vmul.f32 %v53, 0.0078125
    %v84 = vmul.f32 %v55, 0.0078125
    %v85 = vmul.f32 %v57, 0.0078125
    %v86 = vmul.f32 %v59, 0.0078125
    %v87 = vmul.f32 %v61, 0.0078125
    %v88 = vmul.f32 %v63, 0.0078125
    %v89 = vmul.f32 %v65, 0.0078125
    %v90 = vmul.f32 %v67, 0.0078125
    %v91 = vmul.f32 %v69, 0.0078125
    %v92 = vmul.f32 %v71, 0.0078125
    %v93 = vmul.f32 %v73, 0.0078125
    %v94 = vmul.f32 %v75, 0.0078125
    %v95 = vmul.f32 %v77, 0.0078125
    %v96 = vmul.f32 %v79, 0.0078125
    %v97 = vmul.f32 %v81, 0.0078125
    %v114 = vlaneseq
    %v115 = vand.u32 %v114, 127
    %v116 = vlaneseq
    %v117 = vshrl.u32 %v116, 7
    %v118 = vsub.s32 %v115, %v117
    %v119 = vrot.slane %v82, %v118
    %v120 = vadd.s32 %v115, 4294967288
    %v121 = vlaneseq
    %v122 = vshrl.u32 %v121, 7
    %v123 = vsub.s32 %v120, %v122
    %v124 = vrot.slane %v83, %v123
    %vm125 = vcmask 130112
    %v126 = vsel %vm125, %v124, %v119
    %v127 = vadd.s32 %v115, 4294967280
    %v128 = vlaneseq
    %v129 = vshrl.u32 %v128, 7
    %v130 = vsub.s32 %v127, %v129
    %v131 = vrot.slane %v84, %v130
    %vm132 = vcmask 195712
    %v133 = vsel %vm132, %v131, %v126
    %v134 = vadd.s32 %v115, 4294967272
    %v135 = vlaneseq
    %v136 = vshrl.u32 %v135, 7
    %v137 = vsub.s32 %v134, %v136
    %v138 = vrot.slane %v85, %v137
    %vm139 = vcmask 261312
    %v140 = vsel %vm139, %v138, %v133
    %v141 = vlaneseq
    %v142 = vshrl.u32 %v141, 7
    %v143 = vsub.s32 %v115, %v142
    %v144 = vrot.slane %v86, %v143
    %v145 = vlaneseq
    %v146 = vshrl.u32 %v145, 7
    %v147 = vsub.s32 %v120, %v146
    %v148 = vrot.slane %v87, %v147
    %v149 = vsel %vm125, %v148, %v144
    %v150 = vlaneseq
    %v151 = vshrl.u32 %v150, 7
    %v152 = vsub.s32 %v127, %v151
    %v153 = vrot.slane %v88, %v152
    %v154 = vsel %vm132, %v153, %v149
    %v155 = vlaneseq
    %v156 = vshrl.u32 %v155, 7
    %v157 = vsub.s32 %v134, %v156
    %v158 = vrot.slane %v89, %v157
    %v159 = vsel %vm139, %v158, %v154
    %v160 = vlaneseq
    %v161 = vshrl.u32 %v160, 7
    %v162 = vsub.s32 %v115, %v161
    %v163 = vrot.slane %v90, %v162
    %v164 = vlaneseq
    %v165 = vshrl.u32 %v164, 7
    %v166 = vsub.s32 %v120, %v165
    %v167 = vrot.slane %v91, %v166
    %v168 = vsel %vm125, %v167, %v163
    %v169 = vlaneseq
    %v170 = vshrl.u32 %v169, 7
    %v171 = vsub.s32 %v127, %v170
    %v172 = vrot.slane %v92, %v171
    %v173 = vsel %vm132, %v172, %v168
    %v174 = vlaneseq
    %v175 = vshrl.u32 %v174, 7
    %v176 = vsub.s32 %v134, %v175
    %v177 = vrot.slane %v93, %v176
    %v178 = vsel %vm139, %v177, %v173
    %v179 = vlaneseq
    %v180 = vshrl.u32 %v179, 7
    %v181 = vsub.s32 %v115, %v180
    %v182 = vrot.slane %v94, %v181
    %v183 = vlaneseq
    %v184 = vshrl.u32 %v183, 7
    %v185 = vsub.s32 %v120, %v184
    %v186 = vrot.slane %v95, %v185
    %v187 = vsel %vm125, %v186, %v182
    %v188 = vlaneseq
    %v189 = vshrl.u32 %v188, 7
    %v190 = vsub.s32 %v127, %v189
    %v191 = vrot.slane %v96, %v190
    %v192 = vsel %vm132, %v191, %v187
    %v193 = vlaneseq
    %v194 = vshrl.u32 %v193, 7
    %v195 = vsub.s32 %v134, %v194
    %v196 = vrot.slane %v97, %v195
    %v197 = vsel %vm139, %v196, %v192
    %vm198 = vcmask 1041409
    %v199 = vsel %vm198, %v159, %v140
    %vm200 = vcmask 1042434
    %v201 = vsel %vm200, %v178, %v199
    %vm202 = vcmask 1043459
    %v203 = vsel %vm202, %v197, %v201
    %vm204 = vcmask 261120
    %v205 = vsel %vm204, %v203, 0
    %207 = vmatprep.subr.mxu0 0.0
    %208 = vmatpush1.msra.mxu0 0.0
    %209 = vmatprep.subr.mxu0 0.0
    %210 = vmatpush1.msra.mxu0 0.0
    %211 = vmatprep.subr.mxu0 0.0
    %212 = vmatpush1.msra.mxu0 0.0
    %213 = vmatprep.subr.mxu0 0.0
    %214 = vmatpush1.msra.mxu0 0.0
    %215 = vmatprep.subr.mxu0 0.0
    %216 = vmatpush1.msra.mxu0 0.0
    %217 = vmatprep.subr.mxu0 0.0
    %218 = vmatpush1.msra.mxu0 0.0
    %219 = vmatprep.subr.mxu0 0.0
    %220 = vmatpush1.msra.mxu0 0.0
    %221 = vmatprep.subr.mxu0 0.0
    %222 = vmatpush1.msra.mxu0 0.0
    %223 = vmatprep.subr.mxu0 0.0
    %224 = vmatpush1.msra.mxu0 0.0
    %225 = vmatprep.subr.mxu0 0.0
    %226 = vmatpush1.msra.mxu0 0.0
    %227 = vmatprep.subr.mxu0 0.0
    %228 = vmatpush1.msra.mxu0 0.0
    %229 = vmatprep.subr.mxu0 0.0
    %230 = vmatpush1.msra.mxu0 0.0
    %231 = vmatprep.subr.mxu0 0.0
    %232 = vmatpush1.msra.mxu0 %v32
    %233 = vmatprep.subr.mxu0 0.0
    %234 = vmatpush1.msra.mxu0 %v31
    %235 = vmatprep.subr.mxu0 0.0
    %236 = vmatpush1.msra.mxu0 %v30
    %237 = vmatprep.subr.mxu0 0.0
    %238 = vmatpush1.msra.mxu0 %v29
    %239 = vmatprep.subr.mxu0 0.0
    %240 = vmatpush2.msra.mxu0 0.0
    %241 = vmatprep.subr.mxu0 0.0
    %242 = vmatpush2.msra.mxu0 0.0
    %243 = vmatprep.subr.mxu0 0.0
    %244 = vmatpush2.msra.mxu0 0.0
    %245 = vmatprep.subr.mxu0 0.0
    %246 = vmatpush2.msra.mxu0 0.0
    %247 = vmatprep.subr.mxu0 0.0
    %248 = vmatpush2.msra.mxu0 0.0
    %249 = vmatprep.subr.mxu0 0.0
    %250 = vmatpush2.msra.mxu0 0.0
    %251 = vmatprep.subr.mxu0 0.0
    %252 = vmatpush2.msra.mxu0 0.0
    %253 = vmatprep.subr.mxu0 0.0
    %254 = vmatpush2.msra.mxu0 0.0
    %255 = vmatprep.subr.mxu0 0.0
    %256 = vmatpush2.msra.mxu0 0.0
    %257 = vmatprep.subr.mxu0 0.0
    %258 = vmatpush2.msra.mxu0 0.0
    %259 = vmatprep.subr.mxu0 0.0
    %260 = vmatpush2.msra.mxu0 0.0
    %261 = vmatprep.subr.mxu0 0.0
    %262 = vmatpush2.msra.mxu0 0.0
    %263 = vmatprep.subr.mxu0 0.0
    %264 = vmatpush2.msra.mxu0 0.0
    %265 = vmatprep.subr.mxu0 0.0
    %266 = vmatpush2.msra.mxu0 0.0
    %267 = vmatprep.subr.mxu0 0.0
    %268 = vmatpush2.msra.mxu0 0.0
    %269 = vmatprep.subr.mxu0 0.0
    %270 = vmatpush2.msra.mxu0 0.0
    %271 = vmatprep.mubr.f32.mxu0 0.0
    %272 = vmatmul.mubr.f32.gmra.mxu0 %v205
    %v273 = vpop.f32.mrf.mxu0
    %v274 = vadd.f32 0.0, %v273
    %v275 = vpop.f32.mrf.mxu0
    %276 = vdwg.mxu0
    %v277 = vmax.f32 %v274, 0.0
    %vm278 = vcmask 64512
    %v280 = vsel %vm278, %v277, 0
    %282 = vmatprep.subr.mxu0 0.0
    %283 = vmatpush1.msra.mxu0 0.0
    %284 = vmatprep.subr.mxu0 0.0
    %285 = vmatpush1.msra.mxu0 0.0
    %286 = vmatprep.subr.mxu0 0.0
    %287 = vmatpush1.msra.mxu0 0.0
    %288 = vmatprep.subr.mxu0 0.0
    %289 = vmatpush1.msra.mxu0 0.0
    %290 = vmatprep.subr.mxu0 0.0
    %291 = vmatpush1.msra.mxu0 0.0
    %292 = vmatprep.subr.mxu0 0.0
    %293 = vmatpush1.msra.mxu0 0.0
    %294 = vmatprep.subr.mxu0 0.0
    %295 = vmatpush1.msra.mxu0 0.0
    %296 = vmatprep.subr.mxu0 0.0
    %297 = vmatpush1.msra.mxu0 0.0
    %298 = vmatprep.subr.mxu0 0.0
    %299 = vmatpush1.msra.mxu0 0.0
    %300 = vmatprep.subr.mxu0 0.0
    %301 = vmatpush1.msra.mxu0 0.0
    %302 = vmatprep.subr.mxu0 0.0
    %303 = vmatpush1.msra.mxu0 0.0
    %304 = vmatprep.subr.mxu0 0.0
    %305 = vmatpush1.msra.mxu0 0.0
    %306 = vmatprep.subr.mxu0 0.0
    %307 = vmatpush1.msra.mxu0 0.0
    %308 = vmatprep.subr.mxu0 0.0
    %309 = vmatpush1.msra.mxu0 0.0
    %310 = vmatprep.subr.mxu0 0.0
    %311 = vmatpush1.msra.mxu0 0.0
    %312 = vmatprep.subr.mxu0 0.0
    %313 = vmatpush1.msra.mxu0 %v33
    %314 = vmatprep.subr.mxu0 0.0
    %315 = vmatpush2.msra.mxu0 0.0
    %316 = vmatprep.subr.mxu0 0.0
    %317 = vmatpush2.msra.mxu0 0.0
    %318 = vmatprep.subr.mxu0 0.0
    %319 = vmatpush2.msra.mxu0 0.0
    %320 = vmatprep.subr.mxu0 0.0
    %321 = vmatpush2.msra.mxu0 0.0
    %322 = vmatprep.subr.mxu0 0.0
    %323 = vmatpush2.msra.mxu0 0.0
    %324 = vmatprep.subr.mxu0 0.0
    %325 = vmatpush2.msra.mxu0 0.0
    %326 = vmatprep.subr.mxu0 0.0
    %327 = vmatpush2.msra.mxu0 0.0
    %328 = vmatprep.subr.mxu0 0.0
    %329 = vmatpush2.msra.mxu0 0.0
    %330 = vmatprep.subr.mxu0 0.0
    %331 = vmatpush2.msra.mxu0 0.0
    %332 = vmatprep.subr.mxu0 0.0
    %333 = vmatpush2.msra.mxu0 0.0
    %334 = vmatprep.subr.mxu0 0.0
    %335 = vmatpush2.msra.mxu0 0.0
    %336 = vmatprep.subr.mxu0 0.0
    %337 = vmatpush2.msra.mxu0 0.0
    %338 = vmatprep.subr.mxu0 0.0
    %339 = vmatpush2.msra.mxu0 0.0
    %340 = vmatprep.subr.mxu0 0.0
    %341 = vmatpush2.msra.mxu0 0.0
    %342 = vmatprep.subr.mxu0 0.0
    %343 = vmatpush2.msra.mxu0 0.0
    %344 = vmatprep.subr.mxu0 0.0
    %345 = vmatpush2.msra.mxu0 0.0
    %346 = vmatprep.mubr.f32.mxu0 0.0
    %347 = vmatmul.mubr.f32.gmra.mxu0 %v280
    %v348 = vpop.f32.mrf.mxu0
    %v349 = vadd.f32 0.0, %v348
    %v350 = vpop.f32.mrf.mxu0
    %351 = vdwg.mxu0
    %v352 = vxor.u32 %v349, 2147483648
    %v353 = vmul.f32 %v352, 1.442695
    %v354 = vpow.pop %v353
    %v355 = vadd.f32 %v354, 1.0
    %v356 = vrcp.pop %v355
    %v357 = vmul.f32 1.0, %v356
    %v358 = vlaneseq
    %v359 = vshrl.u32 %v358, 7
    %v360 = vsub.s32 0, %v359
    %v361 = vrot.slane %v357, %v360
    %363 = vbcast.lane.b32.xlu0 %v361, 256
    %v364 = vpop.permute.xlu0 %363
    %s366 = sor.u32 256, 8
    %367 = vbcast.lane.b32.xlu0 %v361, %s366
    %v368 = vpop.permute.xlu0 %367
    %s370 = sor.u32 256, 16
    %371 = vbcast.lane.b32.xlu0 %v361, %s370
    %v372 = vpop.permute.xlu0 %371
    %s374 = sor.u32 256, 24
    %375 = vbcast.lane.b32.xlu0 %v361, %s374
    %v376 = vpop.permute.xlu0 %375
    %v377 = vlaneseq
    %v378 = vshrl.u32 %v377, 7
    %v379 = vsub.s32 1, %v378
    %v380 = vrot.slane %v357, %v379
    %382 = vbcast.lane.b32.xlu0 %v380, 256
    %v383 = vpop.permute.xlu0 %382
    %s385 = sor.u32 256, 8
    %386 = vbcast.lane.b32.xlu0 %v380, %s385
    %v387 = vpop.permute.xlu0 %386
    %s389 = sor.u32 256, 16
    %390 = vbcast.lane.b32.xlu0 %v380, %s389
    %v391 = vpop.permute.xlu0 %390
    %s393 = sor.u32 256, 24
    %394 = vbcast.lane.b32.xlu0 %v380, %s393
    %v395 = vpop.permute.xlu0 %394
    %v396 = vlaneseq
    %v397 = vshrl.u32 %v396, 7
    %v398 = vsub.s32 2, %v397
    %v399 = vrot.slane %v357, %v398
    %401 = vbcast.lane.b32.xlu0 %v399, 256
    %v402 = vpop.permute.xlu0 %401
    %s404 = sor.u32 256, 8
    %405 = vbcast.lane.b32.xlu0 %v399, %s404
    %v406 = vpop.permute.xlu0 %405
    %s408 = sor.u32 256, 16
    %409 = vbcast.lane.b32.xlu0 %v399, %s408
    %v410 = vpop.permute.xlu0 %409
    %s412 = sor.u32 256, 24
    %413 = vbcast.lane.b32.xlu0 %v399, %s412
    %v414 = vpop.permute.xlu0 %413
    %v415 = vlaneseq
    %v416 = vshrl.u32 %v415, 7
    %v417 = vsub.s32 3, %v416
    %v418 = vrot.slane %v357, %v417
    %420 = vbcast.lane.b32.xlu0 %v418, 256
    %v421 = vpop.permute.xlu0 %420
    %s423 = sor.u32 256, 8
    %424 = vbcast.lane.b32.xlu0 %v418, %s423
    %v425 = vpop.permute.xlu0 %424
    %s427 = sor.u32 256, 16
    %428 = vbcast.lane.b32.xlu0 %v418, %s427
    %v429 = vpop.permute.xlu0 %428
    %s431 = sor.u32 256, 24
    %432 = vbcast.lane.b32.xlu0 %v418, %s431
    %v433 = vpop.permute.xlu0 %432
    %v434 = vmul.f32 %v34, %v364
    %v435 = vmul.f32 %v35, %v368
    %v436 = vmul.f32 %v36, %v372
    %v437 = vmul.f32 %v37, %v376
    %v438 = vmul.f32 %v38, %v383
    %v439 = vmul.f32 %v39, %v387
    %v440 = vmul.f32 %v40, %v391
    %v441 = vmul.f32 %v41, %v395
    %v442 = vmul.f32 %v42, %v402
    %v443 = vmul.f32 %v43, %v406
    %v444 = vmul.f32 %v44, %v410
    %v445 = vmul.f32 %v45, %v414
    %v446 = vmul.f32 %v46, %v421
    %v447 = vmul.f32 %v47, %v425
    %v448 = vmul.f32 %v48, %v429
    %v449 = vmul.f32 %v49, %v433
    %450 = vst [vmem:[#allocation5] sm:$0xff] %v434
    %451 = vst [vmem:[#allocation5 + $0x8] sm:$0xff] %v435
    %452 = vst [vmem:[#allocation5 + $0x10] sm:$0xff] %v436
    %453 = vst [vmem:[#allocation5 + $0x18] sm:$0xff] %v437
    %454 = vst [vmem:[#allocation5 + $0x20] sm:$0xff] %v438
    %455 = vst [vmem:[#allocation5 + $0x28] sm:$0xff] %v439
    %456 = vst [vmem:[#allocation5 + $0x30] sm:$0xff] %v440
    %457 = vst [vmem:[#allocation5 + $0x38] sm:$0xff] %v441
    %458 = vst [vmem:[#allocation5 + $0x40] sm:$0xff] %v442
    %459 = vst [vmem:[#allocation5 + $0x48] sm:$0xff] %v443
    %460 = vst [vmem:[#allocation5 + $0x50] sm:$0xff] %v444
    %461 = vst [vmem:[#allocation5 + $0x58] sm:$0xff] %v445
    %462 = vst [vmem:[#allocation5 + $0x60] sm:$0xff] %v446
    %463 = vst [vmem:[#allocation5 + $0x68] sm:$0xff] %v447
    %464 = vst [vmem:[#allocation5 + $0x70] sm:$0xff] %v448
    %465 = vst [vmem:[#allocation5 + $0x78] sm:$0xff] %v449
    // Predicated region
    $region18: #{tpu_custom_call.1} parent=1 // pred_check
      _
    $region19: #{tpu_custom_call.1} parent=1 // pred_check_branch
      %467 = sbr.rel (0) target = $region21
    $region20: #{tpu_custom_call.1} parent=1 // pred_region
      %s469 = ssub.s32 2048, 2048
      %470 = vsyncadd [#allocation4], %s469
      %s471 = sshll.u32 [#allocation5], 4
      %s472 = int_to_ptr.vmem [resolvable:$true] %s471
      %477 = dma.vmem_to_hbm [thread:$0]  %s472, 2048, %s3, [#allocation4], 128, 128, 8
    $region21: #{tpu_custom_call.1} parent=1 // pred_fallthru
      _
    // Predicated region
    $region22: #{tpu_custom_call.1} parent=1 // pred_check
      _
    $region23: #{tpu_custom_call.1} parent=1 // pred_check_branch
      %479 = sbr.rel (0) target = $region25
    $region24: #{tpu_custom_call.1} parent=1 // pred_region
      %480 = dma.done [#allocation4], 2048
    $region25: #{tpu_custom_call.1} parent=1 // pred_fallthru
      _
    %481 = vsyncpa [#allocation3], 1
    %482 = vsyncpa [#allocation4], 1

</llo_original>
